<compile_context>
chip_gen: v6e
topology: v6e:2x2x1
jax: 0.10.0
libtpu: 0.0.40
codegen_flags: <defaults>
</compile_context>

<pallas_src>
import functools

import jax
import jax.numpy as jnp
from jax import lax
from jax.experimental import pallas as pl
from jax.experimental.pallas import tpu as pltpu  # noqa: F401  (kept for TPU-specific params if scaled up)


def sinusoidal_pos_kernel(inv_freqs_ref, cos_sel_ref, out_ref, *, seq_len):
    S, D = out_ref.shape
    # Descending positions [seq_len-1, ..., 0], broadcast across all D lanes.
    row = lax.broadcasted_iota(jnp.int32, (S, D), 0).astype(jnp.float32)
    pos = jnp.float32(seq_len - 1) - row                          # (S, D)
    phase = pos * inv_freqs_ref[...]                              # (1, D) bcast over sublanes
    cos_mask = jnp.broadcast_to(cos_sel_ref[...] != 0.0, (S, D))  # lanes >= D/2 -> cos
    out_ref[...] = jnp.where(cos_mask, jnp.cos(phase), jnp.sin(phase))


def make_sinusoidal_position(dim, min_timescale=2.0, max_timescale=10000.0):
    """Returns forward(seq_len) mirroring the PyTorch module (buffers built here, like __init__)."""
    freqs = jnp.arange(0.0, float(dim), float(min_timescale), dtype=jnp.float32)
    inv_freqs = jnp.float32(max_timescale) ** (-freqs / jnp.float32(dim))  # (nfreq,)
    nfreq = int(inv_freqs.shape[0])
    out_dim = 2 * nfreq

    # Lane-tiled buffers so the kernel never slices or concatenates along lanes.
    inv_freqs_full = jnp.concatenate([inv_freqs, inv_freqs])[None, :]      # (1, out_dim)
    cos_sel = jnp.concatenate([jnp.zeros((nfreq,), jnp.float32),
                               jnp.ones((nfreq,), jnp.float32)])[None, :]  # (1, out_dim)

    def forward(seq_len):
        kernel = functools.partial(sinusoidal_pos_kernel, seq_len=int(seq_len))
        return pl.pallas_call(
            kernel,
            out_shape=jax.ShapeDtypeStruct((int(seq_len), out_dim), jnp.float32),
            grid=(1,),
            in_specs=[
                pl.BlockSpec((1, out_dim), lambda i: (0, 0)),
                pl.BlockSpec((1, out_dim), lambda i: (0, 0)),
            ],
            out_specs=pl.BlockSpec((int(seq_len), out_dim), lambda i: (0, 0)),
        )(inv_freqs_full, cos_sel)

    return forward


def reference_sinusoidal_position(seq_len, dim, min_timescale=2.0, max_timescale=10000.0):
    """Pure-JAX mirror of the PyTorch forward."""
    freqs = jnp.arange(0.0, float(dim), float(min_timescale), dtype=jnp.float32)
    inv_freqs = jnp.float32(max_timescale) ** (-freqs / jnp.float32(dim))
    seq = jnp.arange(seq_len - 1, -1, -1.0, dtype=jnp.float32)
    sinusoidal_inp = seq[:, None] * inv_freqs[None, :]
    return jnp.concatenate([jnp.sin(sinusoidal_inp), jnp.cos(sinusoidal_inp)], axis=-1)


if __name__ == "__main__":
    # Forward is fully deterministic (only input is seq_len); key is unused but kept for convention.
    _ = jax.random.PRNGKey(0)

    DIM = 32          # embedding dim -> inv_freqs has 16 entries, output width 32
    pos_enc = make_sinusoidal_position(DIM, min_timescale=2.0, max_timescale=10000.0)

    for seq_len in (8, 16):
        pos_emb = jax.block_until_ready(pos_enc(seq_len))
        ref = reference_sinusoidal_position(seq_len, DIM)
        assert pos_emb.shape == (seq_len, DIM), pos_emb.shape
        assert jnp.allclose(pos_emb, ref, rtol=1e-5, atol=1e-5), (
            float(jnp.max(jnp.abs(pos_emb - ref))))

    print("KERNEL_OK")
</pallas_src>

<mosaic_0001>
module attributes {stable_mosaic.version = 11 : i64} {
  func.func @sinusoidal_pos_kernel(%arg0: i32, %arg1: memref<1x32xf32, #tpu.memory_space<vmem>>, %arg2: memref<1x32xf32, #tpu.memory_space<vmem>>, %arg3: memref<8x32xf32, #tpu.memory_space<vmem>>) attributes {dimension_semantics = [#tpu.dimension_semantics<arbitrary>], iteration_bounds = array<i64: 1>, scalar_prefetch = 0 : i64, scratch_operands = 0 : i64, tpu.core_type = #tpu.core_type<tc>, window_params = [{pipeline_mode = #tpu.pipeline_mode<synchronous>, transform_indices = @transform_0, window_bounds = array<i64: 1, 32>}, {pipeline_mode = #tpu.pipeline_mode<synchronous>, transform_indices = @transform_1, window_bounds = array<i64: 1, 32>}, {pipeline_mode = #tpu.pipeline_mode<synchronous>, transform_indices = @transform_2, window_bounds = array<i64: 8, 32>}]} {
    %0 = tpu.iota {dimensions = array<i32: 0>} : vector<8x32xi32>
    %1 = arith.sitofp %0 : vector<8x32xi32> to vector<8x32xf32>
    %cst = arith.constant 7.000000e+00 : f32
    %2 = vector.broadcast %cst : f32 to vector<8x32xf32>
    %3 = arith.subf %2, %1 : vector<8x32xf32>
    %c0 = arith.constant 0 : index
    %c0_0 = arith.constant 0 : index
    %4 = vector.load %arg1[%c0, %c0_0] : memref<1x32xf32, #tpu.memory_space<vmem>>, vector<1x32xf32>
    %5 = vector.broadcast %4 : vector<1x32xf32> to vector<8x32xf32>
    %6 = arith.mulf %3, %5 : vector<8x32xf32>
    %c0_1 = arith.constant 0 : index
    %c0_2 = arith.constant 0 : index
    %7 = vector.load %arg2[%c0_1, %c0_2] : memref<1x32xf32, #tpu.memory_space<vmem>>, vector<1x32xf32>
    %cst_3 = arith.constant 0.000000e+00 : f32
    %8 = vector.broadcast %cst_3 : f32 to vector<1x32xf32>
    %9 = arith.cmpf one, %7, %8 : vector<1x32xf32>
    %10 = vector.shape_cast %9 : vector<1x32xi1> to vector<1x32xi1>
    %11 = vector.broadcast %10 : vector<1x32xi1> to vector<8x32xi1>
    %12 = math.cos %6 : vector<8x32xf32>
    %13 = math.sin %6 : vector<8x32xf32>
    %14 = arith.select %11, %12, %13 : vector<8x32xi1>, vector<8x32xf32>
    %c0_4 = arith.constant 0 : index
    %c0_5 = arith.constant 0 : index
    %15 = vector.load %arg3[%c0_4, %c0_5] : memref<8x32xf32, #tpu.memory_space<vmem>>, vector<8x32xf32>
    tpu.vector_store %arg3[%c0_4, %c0_5], %14 {strides = array<i32>} : memref<8x32xf32, #tpu.memory_space<vmem>>, vector<8x32xf32>,
    return
  }
  func.func @transform_0(%arg0: i32) -> (i32, i32) {
    %c0_i32 = arith.constant 0 : i32
    %c0_i32_0 = arith.constant 0 : i32
    %c0_i32_1 = arith.constant 0 : i32
    return %c0_i32, %c0_i32_0 : i32, i32
  }
  func.func @transform_1(%arg0: i32) -> (i32, i32) {
    %c0_i32 = arith.constant 0 : i32
    %c0_i32_0 = arith.constant 0 : i32
    %c0_i32_1 = arith.constant 0 : i32
    return %c0_i32, %c0_i32_0 : i32, i32
  }
  func.func @transform_2(%arg0: i32) -> (i32, i32) {
    %c0_i32 = arith.constant 0 : i32
    %c0_i32_0 = arith.constant 0 : i32
    %c0_i32_1 = arith.constant 0 : i32
    return %c0_i32, %c0_i32_0 : i32, i32
  }
}

</mosaic_0001>

<llo_original>
// kernel: tpu_custom_call.1
$region0: #{tpu_custom_call.1}
  #allocation0 [shape = 'u32[]', space=smem, size = 0x4, offset = 0x4, fixed_abs, tag = 'smem constant byte address 0x4 - core index']
  #allocation1 [shape = 'u32[144,128]{1,0:T(1,128)}', space=vmem, size = 0x12000, scoped, tag = 'internal scratch']
  %s0 = inlined_call_operand.hbm [shape: f32[1,32], index: 0, kind: input, shape index: {}]
  %s1 = inlined_call_operand.vmem [shape: f32[1,32], index: 1, kind: input, shape index: {}]
  %s2 = inlined_call_operand.hbm [shape: f32[8,32], index: 2, kind: output, shape index: {}]
  %s3 = sld [smem:[#allocation0]]
  $region22: #{tpu_custom_call.1} parent=0
    _
  %s5 = ssub.s32 1, %s3
  %s6 = scalar_select 0, %s5, %s3
  $region1: #{tpu_custom_call.1} parent=0
    #allocation2 [shape = 'u8[512]{0}', space=vmem, size = 0x400, scoped, tag = 'input window, operand 0, single buffered']
    #allocation3 [shape = 's32[1]{0}', space=sflag, size = 0x4, scoped, tag = 'scoped memory for tpu_custom_call.1']
    #allocation4 [shape = 's32[1]{0}', space=sflag, size = 0x4, scoped, tag = 'scoped memory for tpu_custom_call.1']
    #allocation5 [shape = 'u8[4096]{0}', space=vmem, size = 0x1000, scoped, tag = 'output window, operand 0, single buffered']
    %7 = vsyncpa [#allocation3], 0
    %8 = vsyncpa [#allocation4], 0
    // Predicated region
    $region2: #{tpu_custom_call.1} parent=1 // pred_check
      _
    $region3: #{tpu_custom_call.1} parent=1 // pred_check_branch
      %10 = sbr.rel (0) target = $region5
    $region4: #{tpu_custom_call.1} parent=1 // pred_region
      %s12 = ssub.s32 16, 16
      %13 = vsyncadd [#allocation3], %s12
      %s15 = sshll.u32 [#allocation2], 4
      %s16 = int_to_ptr.vmem [resolvable:$true] %s15
      %18 = dma.hbm_to_vmem [thread:$0]  %s0, 16, %s16, [#allocation3]
    $region5: #{tpu_custom_call.1} parent=1 // pred_fallthru
      _
    // Predicated region
    $region6: #{tpu_custom_call.1} parent=1 // pred_check
      _
    $region7: #{tpu_custom_call.1} parent=1 // pred_check_branch
      %20 = sbr.rel (0) target = $region9
    $region8: #{tpu_custom_call.1} parent=1 // pred_region
      _
    $region9: #{tpu_custom_call.1} parent=1 // pred_fallthru
      _
    // Predicated region
    $region10: #{tpu_custom_call.1} parent=1 // pred_check
      _
    $region11: #{tpu_custom_call.1} parent=1 // pred_check_branch
      %22 = sbr.rel (0) target = $region13
    $region12: #{tpu_custom_call.1} parent=1 // pred_region
      %23 = dma.done [#allocation3], 16
    $region13: #{tpu_custom_call.1} parent=1 // pred_fallthru
      _
    %v24 = vlaneseq
    %v25 = vshrl.u32 %v24, 7
    %v26 = vcvt.s32.f32 %v25
    %v27 = vsub.f32 7.0, %v26
    %v28 = vld [vmem:[#allocation2] sm:$0x1]
    %v30 = vlaneseq
    %v31 = vshrl.u32 %v30, 7
    %v32 = vsub.s32 0, %v31
    %v33 = vrot.slane %v28, %v32
    %v35 = vmul.f32 %v27, %v33
    %v36 = vld [vmem:[%s1] sm:$0x1]
    %vm37 = vcmp.ne.f32.partialorder %v36, 0.0
    %v38 = vsel %vm37, 1, 0
    %v39 = vlaneseq
    %v40 = vshrl.u32 %v39, 7
    %v41 = vsub.s32 0, %v40
    %v42 = vrot.slane %v38, %v41
    %vm43 = vcmp.eq.s32.totalorder %v42, 1
    %v44 = vand.u32 2147483647, %v35
    %vm45 = vcmp.le.f32.partialorder %v44, 0.7853982
    %vm46 = vcmp.lt.s32.totalorder %v35, 0
    %v47 = vand.u32 %v35, 2139095040
    %v48 = vshrl.u32 %v47, 23
    %v49 = vsub.s32 %v48, 127
    %v50 = vand.u32 2147483647, %v35
    %v51 = vand.u32 %v50, 8388607
    %v52 = vor.u32 %v51, 8388608
    %v53 = vsub.s32 0, %v52
    %v54 = vadd.s32 %v49, 1
    %vm55 = vcmp.gt.s32.totalorder %v54, 0
    %v56 = vsel %vm55, %v54, 0
    %v57 = vshrl.u32 %v56, 5
    %v58 = vand.u32 %v56, 31
    %v59 = vsub.s32 32, %v58
    %v60 = vshrl.u32 683565275, %v59
    %v61 = vshll.u32 683565275, %v58
    %v62 = vshrl.u32 2475754826, %v59
    %v63 = vor.u32 %v61, %v62
    %v64 = vshll.u32 2475754826, %v58
    %v65 = vshrl.u32 2131351028, %v59
    %v66 = vor.u32 %v64, %v65
    %v67 = vshll.u32 2131351028, %v58
    %v68 = vshrl.u32 2102212464, %v59
    %v69 = vor.u32 %v67, %v68
    %v70 = vshll.u32 2102212464, %v58
    %v71 = vshrl.u32 920167782, %v59
    %v72 = vor.u32 %v70, %v71
    %v73 = vshll.u32 920167782, %v58
    %v74 = vshrl.u32 1326507024, %v59
    %v75 = vor.u32 %v73, %v74
    %vm76 = vcmp.lt.s32.totalorder %v57, 1
    %vm77 = vcmp.lt.s32.totalorder %v57, 2
    %vm78 = vcmp.lt.s32.totalorder %v57, 3
    %vm79 = vcmp.lt.s32.totalorder %v57, 4
    %v80 = vsel %vm76, %v60, %v63
    %v81 = vsel %vm79, %v69, 2102212464
    %v82 = vsel %vm78, %v66, %v81
    %v83 = vsel %vm77, %v80, %v82
    %v84 = vsel %vm76, %v63, %v66
    %v85 = vsel %vm79, %v72, 920167782
    %v86 = vsel %vm78, %v69, %v85
    %v87 = vsel %vm77, %v84, %v86
    %v88 = vsel %vm76, %v66, %v69
    %v89 = vsel %vm79, %v75, 1326507024
    %v90 = vsel %vm78, %v72, %v89
    %v91 = vsel %vm77, %v88, %v90
    %v92 = vshll.u32 %v52, 8
    %v93 = vmul.u32.u64.compose %v92, %v91
    %v94 = vextract.low.u32 %v93
    %v95 = vextract.high.u32 %v93
    %v96 = vmul.u32.u64.compose %v92, %v87
    %v97 = vextract.low.u32 %v96
    %v98 = vextract.high.u32 %v96
    %v99 = vmul.u32 %v92, %v83
    %v100 = vadd.s32 %v95, %v97
    %vm101 = vc.u32 %v95, %v97
    %v102 = vadd.s32 %v98, 1
    %v103 = vsel %vm101, %v102, %v98
    %v104 = vadd.s32 %v99, %v103
    %v105 = vadd.s32 %v104, 536870912
    %v106 = vshrl.u32 %v105, 30
    %v107 = vshll.u32 %v106, 30
    %v108 = vsub.s32 %v104, %v107
    %vm109 = vcmp.lt.s32.totalorder %v108, 0
    %v110 = vsub.s32 0, %v108
    %v111 = vsel %vm109, %v110, %v108
    %v112 = vclz %v111
    %v113 = vsub.s32 %v112, 2
    %vm114 = vcmp.gt.s32.totalorder 0, %v113
    %v115 = vsel %vm114, 0, %v113
    %v116 = vsub.s32 32, %v115
    %v117 = vshll.u32 %v108, %v115
    %v118 = vshrl.u32 %v100, %v116
    %v119 = vor.u32 %v117, %v118
    %v120 = vsub.s32 4294967266, %v115
    %v121 = vadd.s32 %v120, 127
    %v122 = vshll.u32 %v121, 23
    %v123 = vor.u32 4788187, %v122
    %v124 = vand.u32 2147483647, %v123
    %v126 = vcvt.s32.f32 %v119
    %v127 = vmul.f32 %v126, %v124
    %v128 = vxor.u32 %v127, 2147483648
    %v129 = vsel %vm46, %v128, %v127
    %v130 = vsub.s32 4, %v106
    %v131 = vsel %vm46, %v130, %v106
    %v132 = vsel %vm45, %v35, %v129
    %v133 = vsel %vm45, 0, %v131
    %v134 = vcosq.f32.pop %v132
    %v135 = vsinq.f32.pop %v132
    %vm136 = vweird.f32 %v35
    %v137 = vand.u32 %v133, 3
    %vm138 = vcmp.lt.s32.totalorder %v137, 2
    %vm139 = vcmp.eq.s32.totalorder %v137, 0
    %v140 = vxor.u32 %v135, 2147483648
    %v141 = vsel %vm139, %v134, %v140
    %vm142 = vcmp.eq.s32.totalorder %v137, 2
    %v143 = vxor.u32 %v134, 2147483648
    %v144 = vsel %vm142, %v143, %v135
    %v145 = vsel %vm138, %v141, %v144
    %v146 = vsel %vm136, nan, %v145
    %v147 = vand.u32 2147483647, %v35
    %vm148 = vcmp.le.f32.partialorder %v147, 0.7853982
    %vm149 = vcmp.lt.s32.totalorder %v35, 0
    %v150 = vand.u32 %v35, 2139095040
    %v151 = vshrl.u32 %v150, 23
    %v152 = vsub.s32 %v151, 127
    %v153 = vand.u32 2147483647, %v35
    %v154 = vand.u32 %v153, 8388607
    %v155 = vor.u32 %v154, 8388608
    %v156 = vsub.s32 0, %v155
    %v157 = vadd.s32 %v152, 1
    %vm158 = vcmp.gt.s32.totalorder %v157, 0
    %v159 = vsel %vm158, %v157, 0
    %v160 = vshrl.u32 %v159, 5
    %v161 = vand.u32 %v159, 31
    %v162 = vsub.s32 32, %v161
    %v163 = vshrl.u32 683565275, %v162
    %v164 = vshll.u32 683565275, %v161
    %v165 = vshrl.u32 2475754826, %v162
    %v166 = vor.u32 %v164, %v165
    %v167 = vshll.u32 2475754826, %v161
    %v168 = vshrl.u32 2131351028, %v162
    %v169 = vor.u32 %v167, %v168
    %v170 = vshll.u32 2131351028, %v161
    %v171 = vshrl.u32 2102212464, %v162
    %v172 = vor.u32 %v170, %v171
    %v173 = vshll.u32 2102212464, %v161
    %v174 = vshrl.u32 920167782, %v162
    %v175 = vor.u32 %v173, %v174
    %v176 = vshll.u32 920167782, %v161
    %v177 = vshrl.u32 1326507024, %v162
    %v178 = vor.u32 %v176, %v177
    %vm179 = vcmp.lt.s32.totalorder %v160, 1
    %vm180 = vcmp.lt.s32.totalorder %v160, 2
    %vm181 = vcmp.lt.s32.totalorder %v160, 3
    %vm182 = vcmp.lt.s32.totalorder %v160, 4
    %v183 = vsel %vm179, %v163, %v166
    %v184 = vsel %vm182, %v172, 2102212464
    %v185 = vsel %vm181, %v169, %v184
    %v186 = vsel %vm180, %v183, %v185
    %v187 = vsel %vm179, %v166, %v169
    %v188 = vsel %vm182, %v175, 920167782
    %v189 = vsel %vm181, %v172, %v188
    %v190 = vsel %vm180, %v187, %v189
    %v191 = vsel %vm179, %v169, %v172
    %v192 = vsel %vm182, %v178, 1326507024
    %v193 = vsel %vm181, %v175, %v192
    %v194 = vsel %vm180, %v191, %v193
    %v195 = vshll.u32 %v155, 8
    %v196 = vmul.u32.u64.compose %v195, %v194
    %v197 = vextract.low.u32 %v196
    %v198 = vextract.high.u32 %v196
    %v199 = vmul.u32.u64.compose %v195, %v190
    %v200 = vextract.low.u32 %v199
    %v201 = vextract.high.u32 %v199
    %v202 = vmul.u32 %v195, %v186
    %v203 = vadd.s32 %v198, %v200
    %vm204 = vc.u32 %v198, %v200
    %v205 = vadd.s32 %v201, 1
    %v206 = vsel %vm204, %v205, %v201
    %v207 = vadd.s32 %v202, %v206
    %v208 = vadd.s32 %v207, 536870912
    %v209 = vshrl.u32 %v208, 30
    %v210 = vshll.u32 %v209, 30
    %v211 = vsub.s32 %v207, %v210
    %vm212 = vcmp.lt.s32.totalorder %v211, 0
    %v213 = vsub.s32 0, %v211
    %v214 = vsel %vm212, %v213, %v211
    %v215 = vclz %v214
    %v216 = vsub.s32 %v215, 2
    %vm217 = vcmp.gt.s32.totalorder 0, %v216
    %v218 = vsel %vm217, 0, %v216
    %v219 = vsub.s32 32, %v218
    %v220 = vshll.u32 %v211, %v218
    %v221 = vshrl.u32 %v203, %v219
    %v222 = vor.u32 %v220, %v221
    %v223 = vsub.s32 4294967266, %v218
    %v224 = vadd.s32 %v223, 127
    %v225 = vshll.u32 %v224, 23
    %v226 = vor.u32 4788187, %v225
    %v227 = vand.u32 2147483647, %v226
    %v229 = vcvt.s32.f32 %v222
    %v230 = vmul.f32 %v229, %v227
    %v231 = vxor.u32 %v230, 2147483648
    %v232 = vsel %vm149, %v231, %v230
    %v233 = vsub.s32 4, %v209
    %v234 = vsel %vm149, %v233, %v209
    %v235 = vsel %vm148, %v35, %v232
    %v236 = vsel %vm148, 0, %v234
    %v237 = vcosq.f32.pop %v235
    %v238 = vsinq.f32.pop %v235
    %vm239 = vweird.f32 %v35
    %v240 = vadd.s32 %v236, 3
    %v241 = vand.u32 %v240, 3
    %vm242 = vcmp.lt.s32.totalorder %v241, 2
    %vm243 = vcmp.eq.s32.totalorder %v241, 0
    %v244 = vxor.u32 %v238, 2147483648
    %v245 = vsel %vm243, %v237, %v244
    %vm246 = vcmp.eq.s32.totalorder %v241, 2
    %v247 = vxor.u32 %v237, 2147483648
    %v248 = vsel %vm246, %v247, %v238
    %v249 = vsel %vm242, %v245, %v248
    %v250 = vsel %vm239, nan, %v249
    %v251 = vsel %vm43, %v146, %v250
    %vm252 = vcmask 261120
    %253 = vst.msk [vmem:[#allocation5] sm:$0xff] %vm252, %v251
    // Predicated region
    $region14: #{tpu_custom_call.1} parent=1 // pred_check
      _
    $region15: #{tpu_custom_call.1} parent=1 // pred_check_branch
      %255 = sbr.rel (0) target = $region17
    $region16: #{tpu_custom_call.1} parent=1 // pred_region
      %s257 = ssub.s32 128, 128
      %258 = vsyncadd [#allocation4], %s257
      %s260 = sshll.u32 [#allocation5], 4
      %s261 = int_to_ptr.vmem [resolvable:$true] %s260
      %263 = dma.vmem_to_hbm [thread:$0]  %s261, 128, %s2, [#allocation4]
    $region17: #{tpu_custom_call.1} parent=1 // pred_fallthru
      _
    // Predicated region
    $region18: #{tpu_custom_call.1} parent=1 // pred_check
      _
    $region19: #{tpu_custom_call.1} parent=1 // pred_check_branch
      %265 = sbr.rel (0) target = $region21
    $region20: #{tpu_custom_call.1} parent=1 // pred_region
      %266 = dma.done [#allocation4], 128
    $region21: #{tpu_custom_call.1} parent=1 // pred_fallthru
      _
    %267 = vsyncpa [#allocation3], 1
    %268 = vsyncpa [#allocation4], 1

</llo_original>
